<compile_context>
chip_gen: v6e
topology: v6e:2x2x1
jax: 0.10.0
libtpu: 0.0.40
codegen_flags: <defaults>
</compile_context>

<pallas_src>
import functools
import math

import jax
import jax.numpy as jnp
from jax import lax
from jax.experimental import pallas as pl
from jax.experimental.pallas import tpu as pltpu


def _attention_kernel(x_ref, wqkv_ref, wproj_ref, bias_ref, o_ref, concat_ref,
                      *, num_heads):
    x = x_ref[0]            # (N, C)  bf16
    wqkv = wqkv_ref[...]    # (C, 3C) bf16, resident (q columns pre-scaled)
    wproj = wproj_ref[...]  # (C, C)  bf16, resident
    bias = bias_ref[...]    # (1, C)  f32, resident

    N, C = x.shape
    D = C // num_heads

    # Fused QKV projection: one lane-dense (N, C) @ (C, 3C) matmul, f32 accumulation.
    qkv = jnp.dot(x, wqkv, preferred_element_type=jnp.float32)    # (N, 3C) f32

    # Per-head attention (static unrolled loop; head count is small and static).
    for h in range(num_heads):
        q = qkv[:, h * D:(h + 1) * D]                  # already scaled via folded weight
        k = qkv[:, C + h * D:C + (h + 1) * D]
        v = qkv[:, 2 * C + h * D:2 * C + (h + 1) * D]

        # Scores: contract last axes of q and k directly (no explicit transpose).
        s = lax.dot_general(
            q.astype(jnp.bfloat16), k.astype(jnp.bfloat16),
            dimension_numbers=(((1,), (1,)), ((), ())),
            preferred_element_type=jnp.float32)                   # (N, N) f32

        # Numerically stable softmax in f32; divide replaced by EUP reciprocal.
        s = s - jnp.max(s, axis=-1, keepdims=True)
        p = jnp.exp(s)
        denom = jnp.sum(p, axis=-1, keepdims=True)                # (N, 1)
        p = p * pl.reciprocal(denom, approx=True)

        # Head output (N, D), written into the concat scratch at its column slot.
        oh = jnp.dot(p.astype(jnp.bfloat16), v.astype(jnp.bfloat16),
                     preferred_element_type=jnp.float32)
        concat_ref[:, h * D:(h + 1) * D] = oh

    # Single deep-K output projection over the full (N, C) concat + bias.
    concat = concat_ref[...].astype(jnp.bfloat16)                 # (N, C)
    out = jnp.dot(concat, wproj, preferred_element_type=jnp.float32) + bias
    o_ref[0] = out


def attention_pallas(x, w_qkv, w_proj, b_proj, num_heads):
    """x: (B, N, C) f32.  w_qkv: (3C, C), w_proj: (C, C), b_proj: (C,)  (PyTorch Linear layout)."""
    B, N, C = x.shape
    D = C // num_heads
    scale = D ** (-0.5)

    # Glue (done once per call, in f32, before the bf16 cast):
    #   * transpose weights so the kernel computes y = x @ W.T,
    #   * fold the softmax scale into the q-columns of the QKV weight (qkv_bias=False,
    #     so this is exactly equivalent to scaling q after the projection).
    wqkvT = w_qkv.T                                              # (C, 3C)
    col_scale = jnp.concatenate(
        [jnp.full((C,), scale, jnp.float32), jnp.ones((2 * C,), jnp.float32)])
    wqkvT = (wqkvT * col_scale[None, :]).astype(jnp.bfloat16)    # (C, 3C) bf16
    wprojT = w_proj.T.astype(jnp.bfloat16)                       # (C, C)  bf16
    bias = b_proj.reshape(1, C).astype(jnp.float32)
    x_bf = x.astype(jnp.bfloat16)

    kernel = functools.partial(_attention_kernel, num_heads=num_heads)

    return pl.pallas_call(
        kernel,
        out_shape=jax.ShapeDtypeStruct((B, N, C), jnp.float32),
        grid_spec=pltpu.PrefetchScalarGridSpec(
            num_scalar_prefetch=0,
            grid=(B,),
            in_specs=[
                pl.BlockSpec((1, N, C), lambda b: (b, 0, 0)),       # x, per batch
                pl.BlockSpec((C, 3 * C), lambda b: (0, 0)),         # qkv.weight.T (scaled), resident
                pl.BlockSpec((C, C), lambda b: (0, 0)),             # proj.weight.T, resident
                pl.BlockSpec((1, C), lambda b: (0, 0)),             # proj.bias, resident
            ],
            out_specs=pl.BlockSpec((1, N, C), lambda b: (b, 0, 0)),
            scratch_shapes=[pltpu.VMEM((N, C), jnp.float32)],        # head-concat buffer
        ),
        compiler_params=pltpu.CompilerParams(
            dimension_semantics=("parallel",),
        ),
    )(x_bf, wqkvT, wprojT, bias)


def attention_ref(x, w_qkv, w_proj, b_proj, num_heads):
    """Pure-JAX (f32) transcription of the PyTorch forward, for verification."""
    B, N, C = x.shape
    D = C // num_heads
    scale = D ** (-0.5)
    qkv = x @ w_qkv.T                                            # (B, N, 3C)
    qkv = qkv.reshape(B, N, 3, num_heads, D).transpose(2, 0, 3, 1, 4)
    q, k, v = qkv[0], qkv[1], qkv[2]                             # (B, H, N, D)
    attn = (q @ jnp.swapaxes(k, -2, -1)) * scale                 # (B, H, N, N)
    attn = jax.nn.softmax(attn, axis=-1)
    out = (attn @ v).transpose(0, 2, 1, 3).reshape(B, N, C)      # (B, N, C)
    return out @ w_proj.T + b_proj


if __name__ == "__main__":
    B, N, C = 2, 8, 32
    num_heads = 4

    key = jax.random.PRNGKey(0)
    kx, kqkv, kw, kb = jax.random.split(key, 4)

    x = jax.random.normal(kx, (B, N, C), dtype=jnp.float32)

    # Deterministic synthetic parameters (PyTorch Linear shapes; qkv_bias=False).
    bound = 1.0 / math.sqrt(C)
    w_qkv = jax.random.uniform(kqkv, (3 * C, C), jnp.float32, -bound, bound)
    w_proj = jax.random.uniform(kw, (C, C), jnp.float32, -bound, bound)
    b_proj = jax.random.uniform(kb, (C,), jnp.float32, -bound, bound)

    out = attention_pallas(x, w_qkv, w_proj, b_proj, num_heads)
    out = jax.block_until_ready(out)

    ref = attention_ref(x, w_qkv, w_proj, b_proj, num_heads)
    assert out.shape == (B, N, C)
    # bf16 MXU operands with f32 accumulation -> bf16-level tolerance vs the f32 reference.
    assert jnp.allclose(out, ref, rtol=3e-2, atol=3e-2), "mismatch vs reference"

    print("KERNEL_OK")
</pallas_src>

<mosaic_0001>
module attributes {stable_mosaic.version = 11 : i64} {
  func.func @_attention_kernel(%arg0: i32, %arg1: memref<1x8x32xbf16, #tpu.memory_space<vmem>>, %arg2: memref<32x96xbf16, #tpu.memory_space<vmem>>, %arg3: memref<32x32xbf16, #tpu.memory_space<vmem>>, %arg4: memref<1x32xf32, #tpu.memory_space<vmem>>, %arg5: memref<1x8x32xf32, #tpu.memory_space<vmem>>, %arg6: memref<8x32xf32, #tpu.memory_space<vmem>>) attributes {dimension_semantics = [#tpu.dimension_semantics<parallel>], iteration_bounds = array<i64: 2>, scalar_prefetch = 0 : i64, scratch_operands = 1 : i64, tpu.core_type = #tpu.core_type<tc>, window_params = [{transform_indices = @transform_0, window_bounds = array<i64: 1, 8, 32>}, {pipeline_mode = #tpu.pipeline_mode<synchronous>, transform_indices = @transform_1, window_bounds = array<i64: 32, 96>}, {pipeline_mode = #tpu.pipeline_mode<synchronous>, transform_indices = @transform_2, window_bounds = array<i64: 32, 32>}, {pipeline_mode = #tpu.pipeline_mode<synchronous>, transform_indices = @transform_3, window_bounds = array<i64: 1, 32>}, {transform_indices = @transform_4, window_bounds = array<i64: 1, 8, 32>}]} {
    %c0 = arith.constant 0 : index
    %c0_0 = arith.constant 0 : index
    %c0_1 = arith.constant 0 : index
    %0 = vector.load %arg1[%c0, %c0_0, %c0_1] : memref<1x8x32xbf16, #tpu.memory_space<vmem>>, vector<1x8x32xbf16>
    %1 = vector.shape_cast %0 : vector<1x8x32xbf16> to vector<8x32xbf16>
    %c0_2 = arith.constant 0 : index
    %c0_3 = arith.constant 0 : index
    %2 = vector.load %arg2[%c0_2, %c0_3] : memref<32x96xbf16, #tpu.memory_space<vmem>>, vector<32x96xbf16>
    %c0_4 = arith.constant 0 : index
    %c0_5 = arith.constant 0 : index
    %3 = vector.load %arg3[%c0_4, %c0_5] : memref<32x32xbf16, #tpu.memory_space<vmem>>, vector<32x32xbf16>
    %c0_6 = arith.constant 0 : index
    %c0_7 = arith.constant 0 : index
    %4 = vector.load %arg4[%c0_6, %c0_7] : memref<1x32xf32, #tpu.memory_space<vmem>>, vector<1x32xf32>
    %cst = arith.constant dense<0.000000e+00> : vector<8x96xf32>
    %5 = tpu.matmul %1, %2, %cst {dimension_numbers = #tpu.dot_dimension_numbers<[1], [0], [0], [1], [0, 0, 1, 1], [], []>} : vector<8x32xbf16>, vector<32x96xbf16>, vector<8x96xf32> -> vector<8x96xf32>
    %6 = vector.extract_strided_slice %5 {offsets = [0, 0], sizes = [8, 8], strides = [1, 1]} : vector<8x96xf32> to vector<8x8xf32>
    %7 = vector.extract_strided_slice %5 {offsets = [0, 32], sizes = [8, 8], strides = [1, 1]} : vector<8x96xf32> to vector<8x8xf32>
    %8 = vector.extract_strided_slice %5 {offsets = [0, 64], sizes = [8, 8], strides = [1, 1]} : vector<8x96xf32> to vector<8x8xf32>
    %9 = arith.truncf %6 : vector<8x8xf32> to vector<8x8xbf16>
    %10 = arith.truncf %7 : vector<8x8xf32> to vector<8x8xbf16>
    %cst_8 = arith.constant dense<0.000000e+00> : vector<8x8xf32>
    %11 = tpu.matmul %9, %10, %cst_8 {dimension_numbers = #tpu.dot_dimension_numbers<[1], [1], [0], [0], [0, 0, 1, 0], [], []>} : vector<8x8xbf16>, vector<8x8xbf16>, vector<8x8xf32> -> vector<8x8xf32>
    %cst_9 = arith.constant dense<0xFF800000> : vector<8xf32>
    %12 = vector.multi_reduction <maximumf>, %11, %cst_9 [1] : vector<8x8xf32> to vector<8xf32>
    %13 = vector.shape_cast %12 : vector<8xf32> to vector<8x1xf32>
    %14 = vector.broadcast %13 : vector<8x1xf32> to vector<8x8xf32>
    %15 = arith.subf %11, %14 : vector<8x8xf32>
    %16 = math.exp %15 : vector<8x8xf32>
    %cst_10 = arith.constant dense<0.000000e+00> : vector<8xf32>
    %17 = vector.multi_reduction <add>, %16, %cst_10 [1] : vector<8x8xf32> to vector<8xf32>
    %18 = vector.shape_cast %17 : vector<8xf32> to vector<8x1xf32>
    %19 = tpu.reciprocal %18 {approx = true} : vector<8x1xf32> -> vector<8x1xf32>
    %20 = vector.broadcast %19 : vector<8x1xf32> to vector<8x8xf32>
    %21 = arith.mulf %16, %20 : vector<8x8xf32>
    %22 = arith.truncf %21 : vector<8x8xf32> to vector<8x8xbf16>
    %23 = arith.truncf %8 : vector<8x8xf32> to vector<8x8xbf16>
    %cst_11 = arith.constant dense<0.000000e+00> : vector<8x8xf32>
    %24 = tpu.matmul %22, %23, %cst_11 {dimension_numbers = #tpu.dot_dimension_numbers<[1], [0], [0], [1], [0, 0, 1, 1], [], []>} : vector<8x8xbf16>, vector<8x8xbf16>, vector<8x8xf32> -> vector<8x8xf32>
    %c0_12 = arith.constant 0 : index
    %c0_13 = arith.constant 0 : index
    %25 = vector.load %arg6[%c0_12, %c0_13] : memref<8x32xf32, #tpu.memory_space<vmem>>, vector<8x8xf32>
    tpu.vector_store %arg6[%c0_12, %c0_13], %24 {strides = array<i32>} : memref<8x32xf32, #tpu.memory_space<vmem>>, vector<8x8xf32>,
    %26 = vector.extract_strided_slice %5 {offsets = [0, 8], sizes = [8, 8], strides = [1, 1]} : vector<8x96xf32> to vector<8x8xf32>
    %27 = vector.extract_strided_slice %5 {offsets = [0, 40], sizes = [8, 8], strides = [1, 1]} : vector<8x96xf32> to vector<8x8xf32>
    %28 = vector.extract_strided_slice %5 {offsets = [0, 72], sizes = [8, 8], strides = [1, 1]} : vector<8x96xf32> to vector<8x8xf32>
    %29 = arith.truncf %26 : vector<8x8xf32> to vector<8x8xbf16>
    %30 = arith.truncf %27 : vector<8x8xf32> to vector<8x8xbf16>
    %cst_14 = arith.constant dense<0.000000e+00> : vector<8x8xf32>
    %31 = tpu.matmul %29, %30, %cst_14 {dimension_numbers = #tpu.dot_dimension_numbers<[1], [1], [0], [0], [0, 0, 1, 0], [], []>} : vector<8x8xbf16>, vector<8x8xbf16>, vector<8x8xf32> -> vector<8x8xf32>
    %cst_15 = arith.constant dense<0xFF800000> : vector<8xf32>
    %32 = vector.multi_reduction <maximumf>, %31, %cst_15 [1] : vector<8x8xf32> to vector<8xf32>
    %33 = vector.shape_cast %32 : vector<8xf32> to vector<8x1xf32>
    %34 = vector.broadcast %33 : vector<8x1xf32> to vector<8x8xf32>
    %35 = arith.subf %31, %34 : vector<8x8xf32>
    %36 = math.exp %35 : vector<8x8xf32>
    %cst_16 = arith.constant dense<0.000000e+00> : vector<8xf32>
    %37 = vector.multi_reduction <add>, %36, %cst_16 [1] : vector<8x8xf32> to vector<8xf32>
    %38 = vector.shape_cast %37 : vector<8xf32> to vector<8x1xf32>
    %39 = tpu.reciprocal %38 {approx = true} : vector<8x1xf32> -> vector<8x1xf32>
    %40 = vector.broadcast %39 : vector<8x1xf32> to vector<8x8xf32>
    %41 = arith.mulf %36, %40 : vector<8x8xf32>
    %42 = arith.truncf %41 : vector<8x8xf32> to vector<8x8xbf16>
    %43 = arith.truncf %28 : vector<8x8xf32> to vector<8x8xbf16>
    %cst_17 = arith.constant dense<0.000000e+00> : vector<8x8xf32>
    %44 = tpu.matmul %42, %43, %cst_17 {dimension_numbers = #tpu.dot_dimension_numbers<[1], [0], [0], [1], [0, 0, 1, 1], [], []>} : vector<8x8xbf16>, vector<8x8xbf16>, vector<8x8xf32> -> vector<8x8xf32>
    %c0_18 = arith.constant 0 : index
    %c8 = arith.constant 8 : index
    %45 = vector.load %arg6[%c0_18, %c8] : memref<8x32xf32, #tpu.memory_space<vmem>>, vector<8x8xf32>
    tpu.vector_store %arg6[%c0_18, %c8], %44 {strides = array<i32>} : memref<8x32xf32, #tpu.memory_space<vmem>>, vector<8x8xf32>,
    %46 = vector.extract_strided_slice %5 {offsets = [0, 16], sizes = [8, 8], strides = [1, 1]} : vector<8x96xf32> to vector<8x8xf32>
    %47 = vector.extract_strided_slice %5 {offsets = [0, 48], sizes = [8, 8], strides = [1, 1]} : vector<8x96xf32> to vector<8x8xf32>
    %48 = vector.extract_strided_slice %5 {offsets = [0, 80], sizes = [8, 8], strides = [1, 1]} : vector<8x96xf32> to vector<8x8xf32>
    %49 = arith.truncf %46 : vector<8x8xf32> to vector<8x8xbf16>
    %50 = arith.truncf %47 : vector<8x8xf32> to vector<8x8xbf16>
    %cst_19 = arith.constant dense<0.000000e+00> : vector<8x8xf32>
    %51 = tpu.matmul %49, %50, %cst_19 {dimension_numbers = #tpu.dot_dimension_numbers<[1], [1], [0], [0], [0, 0, 1, 0], [], []>} : vector<8x8xbf16>, vector<8x8xbf16>, vector<8x8xf32> -> vector<8x8xf32>
    %cst_20 = arith.constant dense<0xFF800000> : vector<8xf32>
    %52 = vector.multi_reduction <maximumf>, %51, %cst_20 [1] : vector<8x8xf32> to vector<8xf32>
    %53 = vector.shape_cast %52 : vector<8xf32> to vector<8x1xf32>
    %54 = vector.broadcast %53 : vector<8x1xf32> to vector<8x8xf32>
    %55 = arith.subf %51, %54 : vector<8x8xf32>
    %56 = math.exp %55 : vector<8x8xf32>
    %cst_21 = arith.constant dense<0.000000e+00> : vector<8xf32>
    %57 = vector.multi_reduction <add>, %56, %cst_21 [1] : vector<8x8xf32> to vector<8xf32>
    %58 = vector.shape_cast %57 : vector<8xf32> to vector<8x1xf32>
    %59 = tpu.reciprocal %58 {approx = true} : vector<8x1xf32> -> vector<8x1xf32>
    %60 = vector.broadcast %59 : vector<8x1xf32> to vector<8x8xf32>
    %61 = arith.mulf %56, %60 : vector<8x8xf32>
    %62 = arith.truncf %61 : vector<8x8xf32> to vector<8x8xbf16>
    %63 = arith.truncf %48 : vector<8x8xf32> to vector<8x8xbf16>
    %cst_22 = arith.constant dense<0.000000e+00> : vector<8x8xf32>
    %64 = tpu.matmul %62, %63, %cst_22 {dimension_numbers = #tpu.dot_dimension_numbers<[1], [0], [0], [1], [0, 0, 1, 1], [], []>} : vector<8x8xbf16>, vector<8x8xbf16>, vector<8x8xf32> -> vector<8x8xf32>
    %c0_23 = arith.constant 0 : index
    %c16 = arith.constant 16 : index
    %65 = vector.load %arg6[%c0_23, %c16] : memref<8x32xf32, #tpu.memory_space<vmem>>, vector<8x8xf32>
    tpu.vector_store %arg6[%c0_23, %c16], %64 {strides = array<i32>} : memref<8x32xf32, #tpu.memory_space<vmem>>, vector<8x8xf32>,
    %66 = vector.extract_strided_slice %5 {offsets = [0, 24], sizes = [8, 8], strides = [1, 1]} : vector<8x96xf32> to vector<8x8xf32>
    %67 = vector.extract_strided_slice %5 {offsets = [0, 56], sizes = [8, 8], strides = [1, 1]} : vector<8x96xf32> to vector<8x8xf32>
    %68 = vector.extract_strided_slice %5 {offsets = [0, 88], sizes = [8, 8], strides = [1, 1]} : vector<8x96xf32> to vector<8x8xf32>
    %69 = arith.truncf %66 : vector<8x8xf32> to vector<8x8xbf16>
    %70 = arith.truncf %67 : vector<8x8xf32> to vector<8x8xbf16>
    %cst_24 = arith.constant dense<0.000000e+00> : vector<8x8xf32>
    %71 = tpu.matmul %69, %70, %cst_24 {dimension_numbers = #tpu.dot_dimension_numbers<[1], [1], [0], [0], [0, 0, 1, 0], [], []>} : vector<8x8xbf16>, vector<8x8xbf16>, vector<8x8xf32> -> vector<8x8xf32>
    %cst_25 = arith.constant dense<0xFF800000> : vector<8xf32>
    %72 = vector.multi_reduction <maximumf>, %71, %cst_25 [1] : vector<8x8xf32> to vector<8xf32>
    %73 = vector.shape_cast %72 : vector<8xf32> to vector<8x1xf32>
    %74 = vector.broadcast %73 : vector<8x1xf32> to vector<8x8xf32>
    %75 = arith.subf %71, %74 : vector<8x8xf32>
    %76 = math.exp %75 : vector<8x8xf32>
    %cst_26 = arith.constant dense<0.000000e+00> : vector<8xf32>
    %77 = vector.multi_reduction <add>, %76, %cst_26 [1] : vector<8x8xf32> to vector<8xf32>
    %78 = vector.shape_cast %77 : vector<8xf32> to vector<8x1xf32>
    %79 = tpu.reciprocal %78 {approx = true} : vector<8x1xf32> -> vector<8x1xf32>
    %80 = vector.broadcast %79 : vector<8x1xf32> to vector<8x8xf32>
    %81 = arith.mulf %76, %80 : vector<8x8xf32>
    %82 = arith.truncf %81 : vector<8x8xf32> to vector<8x8xbf16>
    %83 = arith.truncf %68 : vector<8x8xf32> to vector<8x8xbf16>
    %cst_27 = arith.constant dense<0.000000e+00> : vector<8x8xf32>
    %84 = tpu.matmul %82, %83, %cst_27 {dimension_numbers = #tpu.dot_dimension_numbers<[1], [0], [0], [1], [0, 0, 1, 1], [], []>} : vector<8x8xbf16>, vector<8x8xbf16>, vector<8x8xf32> -> vector<8x8xf32>
    %c0_28 = arith.constant 0 : index
    %c24 = arith.constant 24 : index
    %85 = vector.load %arg6[%c0_28, %c24] : memref<8x32xf32, #tpu.memory_space<vmem>>, vector<8x8xf32>
    tpu.vector_store %arg6[%c0_28, %c24], %84 {strides = array<i32>} : memref<8x32xf32, #tpu.memory_space<vmem>>, vector<8x8xf32>,
    %c0_29 = arith.constant 0 : index
    %c0_30 = arith.constant 0 : index
    %86 = vector.load %arg6[%c0_29, %c0_30] : memref<8x32xf32, #tpu.memory_space<vmem>>, vector<8x32xf32>
    %87 = arith.truncf %86 : vector<8x32xf32> to vector<8x32xbf16>
    %cst_31 = arith.constant dense<0.000000e+00> : vector<8x32xf32>
    %88 = tpu.matmul %87, %3, %cst_31 {dimension_numbers = #tpu.dot_dimension_numbers<[1], [0], [0], [1], [0, 0, 1, 1], [], []>} : vector<8x32xbf16>, vector<32x32xbf16>, vector<8x32xf32> -> vector<8x32xf32>
    %89 = vector.broadcast %4 : vector<1x32xf32> to vector<8x32xf32>
    %90 = arith.addf %88, %89 : vector<8x32xf32>
    %c0_32 = arith.constant 0 : index
    %c0_33 = arith.constant 0 : index
    %c0_34 = arith.constant 0 : index
    %91 = vector.load %arg5[%c0_32, %c0_33, %c0_34] : memref<1x8x32xf32, #tpu.memory_space<vmem>>, vector<1x8x32xf32>
    %92 = vector.shape_cast %91 : vector<1x8x32xf32> to vector<8x32xf32>
    %93 = vector.shape_cast %90 : vector<8x32xf32> to vector<1x8x32xf32>
    tpu.vector_store %arg5[%c0_32, %c0_33, %c0_34], %93 {strides = array<i32>} : memref<1x8x32xf32, #tpu.memory_space<vmem>>, vector<1x8x32xf32>,
    return
  }
  func.func @transform_0(%arg0: i32) -> (i32, i32, i32) {
    %c0_i32 = arith.constant 0 : i32
    %c0_i32_0 = arith.constant 0 : i32
    %c0_i32_1 = arith.constant 0 : i32
    return %arg0, %c0_i32, %c0_i32_0 : i32, i32, i32
  }
  func.func @transform_1(%arg0: i32) -> (i32, i32) {
    %c0_i32 = arith.constant 0 : i32
    %c0_i32_0 = arith.constant 0 : i32
    %c0_i32_1 = arith.constant 0 : i32
    return %c0_i32, %c0_i32_0 : i32, i32
  }
  func.func @transform_2(%arg0: i32) -> (i32, i32) {
    %c0_i32 = arith.constant 0 : i32
    %c0_i32_0 = arith.constant 0 : i32
    %c0_i32_1 = arith.constant 0 : i32
    return %c0_i32, %c0_i32_0 : i32, i32
  }
  func.func @transform_3(%arg0: i32) -> (i32, i32) {
    %c0_i32 = arith.constant 0 : i32
    %c0_i32_0 = arith.constant 0 : i32
    %c0_i32_1 = arith.constant 0 : i32
    return %c0_i32, %c0_i32_0 : i32, i32
  }
  func.func @transform_4(%arg0: i32) -> (i32, i32, i32) {
    %c0_i32 = arith.constant 0 : i32
    %c0_i32_0 = arith.constant 0 : i32
    %c0_i32_1 = arith.constant 0 : i32
    return %arg0, %c0_i32, %c0_i32_0 : i32, i32, i32
  }
}

</mosaic_0001>

<llo_original>
// kernel: tpu_custom_call.1
$region0: #{tpu_custom_call.1}
  #allocation0 [shape = 'u32[]', space=smem, size = 0x4, offset = 0x4, fixed_abs, tag = 'smem constant byte address 0x4 - core index']
  #allocation1 [shape = 'u32[144,128]{1,0:T(1,128)}', space=vmem, size = 0x12000, scoped, tag = 'internal scratch']
  #allocation2 [shape = 'f32[8,32]{1,0:T(8,128)}', space=vmem, size = 0x1000, scoped, tag = 'scratch operand']
  %s0 = inlined_call_operand.hbm [shape: bf16[2,8,32], index: 0, kind: input, shape index: {}]
  %s1 = inlined_call_operand.hbm [shape: bf16[32,96], index: 1, kind: input, shape index: {}]
  %s2 = inlined_call_operand.hbm [shape: bf16[32,32], index: 2, kind: input, shape index: {}]
  %s3 = inlined_call_operand.vmem [shape: f32[1,32], index: 3, kind: input, shape index: {}]
  %s4 = inlined_call_operand.hbm [shape: f32[2,8,32], index: 4, kind: output, shape index: {}]
  %s5 = sld [smem:[#allocation0]]
  $region61: #{tpu_custom_call.1} parent=0
    _
  %s7 = ssub.s32 1, %s5
  %s8 = scalar_select 0, %s7, %s5
  $region1: #{tpu_custom_call.1} parent=0
    #allocation3 [shape = 'u8[4096]{0}', space=vmem, size = 0x1000, scoped, tag = 'input window, operand 0']
    #allocation4 [shape = 's32[2]{0}', space=sflag, size = 0x8, scoped, tag = 'scoped memory for tpu_custom_call.1']
    #allocation5 [shape = 's32[2]{0}', space=sflag, size = 0x8, scoped, tag = 'scoped memory for tpu_custom_call.1']
    #allocation6 [shape = 'u8[8192]{0}', space=vmem, size = 0x2000, scoped, tag = 'input window, operand 1, single buffered']
    #allocation7 [shape = 's32[1]{0}', space=sflag, size = 0x4, scoped, tag = 'scoped memory for tpu_custom_call.1']
    #allocation8 [shape = 'u8[8192]{0}', space=vmem, size = 0x2000, scoped, tag = 'input window, operand 2, single buffered']
    #allocation9 [shape = 'u8[8192]{0}', space=vmem, size = 0x2000, scoped, tag = 'output window, operand 0']
    %9 = vsyncpa [#allocation4], 0
    %s10 = scalar_lea.sflag [#allocation4], 1
    %11 = vsyncpa %s10, 0
    %12 = vsyncpa [#allocation7], 0
    %13 = vsyncpa [#allocation5], 0
    %s14 = scalar_lea.sflag [#allocation5], 1
    %15 = vsyncpa %s14, 0
    loop: start=0, step=1, limit=4
    $region2: #{tpu_custom_call.1} parent=1 // loop_pre_header
      _
    $region3: #{tpu_custom_call.1} parent=1 // loop_header
      %s17 = sphi 0, %s21
      %p18 = scmp.ge.s32.totalorder %s17, 4
      %s27 = sphi 0, %s29
      %s30 = sphi 0, %s27
      %s31 = sphi 0, %s30
      %s47 = sphi 0, %s31
      %s51 = sphi 0, %s51
      %s53 = sphi 0, %s51
      %s54 = sphi 0, %s53
      %s68 = sphi 0, %s54
      %s72 = sphi 0, %s72
      %s74 = sphi 0, %s72
      %s75 = sphi 0, %s74
      %s89 = sphi 0, %s75
      %s93 = sphi 0, %s93
      %s95 = sphi 0, %s93
      %s96 = sphi 0, %s95
      %s110 = sphi 0, %s96
      %s116 = sphi 0, %s118
      %s119 = sphi 0, %s116
      %s120 = sphi 0, %s119
      %s136 = sphi 0, %s120
    $region4: #{tpu_custom_call.1} parent=1 // loop_header_branch
      %20 = sbr.rel (%p18) target = $region8
    $region5: #{tpu_custom_call.1} parent=1 // loop_body
      %s22 = ssub.s32 %s17, 1
      %s23 = ssub.s32 %s17, 2
      %s24 = sadd.s32 %s17, 1
      %s25 = ssub.s32 %s17, %s24
      %p26 = scmp.eq.s32.totalorder %s25, 0
      %s28 = sadd.s32 %s27, 1
      %s29 = scalar_select %p26, %s27, %s28
      %p32 = pneg %p26
      %p33 = scmp.eq.s32.totalorder %s17, 1
      %p34 = por %p32, %p33
      %p35 = scmp.ne.s32.totalorder %s27, %s30
      %p36 = scmp.eq.s32.totalorder %s17, 0
      %p37 = por %p35, %p36
      %p38 = scmp.ne.s32.totalorder %s27, %s30
      %p39 = scmp.eq.s32.totalorder %s22, 1
      %p40 = por %p38, %p39
      %p41 = scmp.ne.s32.totalorder %s30, %s31
      %p42 = scmp.eq.s32.totalorder %s22, 0
      %p43 = por %p41, %p42
      %p44 = scmp.ne.s32.totalorder %s30, %s31
      %p45 = scmp.eq.s32.totalorder %s23, 1
      %p46 = por %p44, %p45
      %p48 = scmp.ne.s32.totalorder %s31, %s47
      %p49 = scmp.eq.s32.totalorder %s23, 0
      %p50 = por %p48, %p49
      %s52 = sadd.s32 %s51, 1
      %p55 = scmp.eq.s32.totalorder %s17, 1
      %p56 = scmp.ne.s32.totalorder %s51, %s53
      %p57 = scmp.eq.s32.totalorder %s17, 0
      %p58 = por %p56, %p57
      %p59 = scmp.ne.s32.totalorder %s51, %s53
      %p60 = scmp.eq.s32.totalorder %s22, 1
      %p61 = por %p59, %p60
      %p62 = scmp.ne.s32.totalorder %s53, %s54
      %p63 = scmp.eq.s32.totalorder %s22, 0
      %p64 = por %p62, %p63
      %p65 = scmp.ne.s32.totalorder %s53, %s54
      %p66 = scmp.eq.s32.totalorder %s23, 1
      %p67 = por %p65, %p66
      %p69 = scmp.ne.s32.totalorder %s54, %s68
      %p70 = scmp.eq.s32.totalorder %s23, 0
      %p71 = por %p69, %p70
      %s73 = sadd.s32 %s72, 1
      %p76 = scmp.eq.s32.totalorder %s17, 1
      %p77 = scmp.ne.s32.totalorder %s72, %s74
      %p78 = scmp.eq.s32.totalorder %s17, 0
      %p79 = por %p77, %p78
      %p80 = scmp.ne.s32.totalorder %s72, %s74
      %p81 = scmp.eq.s32.totalorder %s22, 1
      %p82 = por %p80, %p81
      %p83 = scmp.ne.s32.totalorder %s74, %s75
      %p84 = scmp.eq.s32.totalorder %s22, 0
      %p85 = por %p83, %p84
      %p86 = scmp.ne.s32.totalorder %s74, %s75
      %p87 = scmp.eq.s32.totalorder %s23, 1
      %p88 = por %p86, %p87
      %p90 = scmp.ne.s32.totalorder %s75, %s89
      %p91 = scmp.eq.s32.totalorder %s23, 0
      %p92 = por %p90, %p91
      %s94 = sadd.s32 %s93, 1
      %p97 = scmp.eq.s32.totalorder %s17, 1
      %p98 = scmp.ne.s32.totalorder %s93, %s95
      %p99 = scmp.eq.s32.totalorder %s17, 0
      %p100 = por %p98, %p99
      %p101 = scmp.ne.s32.totalorder %s93, %s95
      %p102 = scmp.eq.s32.totalorder %s22, 1
      %p103 = por %p101, %p102
      %p104 = scmp.ne.s32.totalorder %s95, %s96
      %p105 = scmp.eq.s32.totalorder %s22, 0
      %p106 = por %p104, %p105
      %p107 = scmp.ne.s32.totalorder %s95, %s96
      %p108 = scmp.eq.s32.totalorder %s23, 1
      %p109 = por %p107, %p108
      %p111 = scmp.ne.s32.totalorder %s96, %s110
      %p112 = scmp.eq.s32.totalorder %s23, 0
      %p113 = por %p111, %p112
      %s114 = ssub.s32 %s17, %s24
      %p115 = scmp.eq.s32.totalorder %s114, 0
      %s117 = sadd.s32 %s116, 1
      %s118 = scalar_select %p115, %s116, %s117
      %p121 = pneg %p115
      %p122 = scmp.eq.s32.totalorder %s17, 1
      %p123 = por %p121, %p122
      %p124 = scmp.ne.s32.totalorder %s116, %s119
      %p125 = scmp.eq.s32.totalorder %s17, 0
      %p126 = por %p124, %p125
      %p127 = scmp.ne.s32.totalorder %s116, %s119
      %p128 = scmp.eq.s32.totalorder %s22, 1
      %p129 = por %p127, %p128
      %p130 = scmp.ne.s32.totalorder %s119, %s120
      %p131 = scmp.eq.s32.totalorder %s22, 0
      %p132 = por %p130, %p131
      %p133 = scmp.ne.s32.totalorder %s119, %s120
      %p134 = scmp.eq.s32.totalorder %s23, 1
      %p135 = por %p133, %p134
      %p137 = scmp.ne.s32.totalorder %s120, %s136
      %p138 = scmp.eq.s32.totalorder %s23, 0
      %p139 = por %p137, %p138
      %p140 = scmp.le.s32.totalorder 1, %s17
      %p141 = scmp.lt.s32.totalorder %s17, 3
      %p142 = pnand %p140, %p141
      %p143 = pneg %p142
      // Predicated region
      $region9: #{tpu_custom_call.1} parent=5 // pred_check
        _
      $region10: #{tpu_custom_call.1} parent=5 // pred_check_branch
        %145 = sbr.rel (%p142) target = $region12
      $region11: #{tpu_custom_call.1} parent=5 // pred_region
        %s146 = ssub.s32 %s17, 1
        // Predicated region
        $region13: #{tpu_custom_call.1} parent=11 // pred_check
          %p147 = pneg %p64
        $region14: #{tpu_custom_call.1} parent=11 // pred_check_branch
          %149 = sbr.rel (%p147) target = $region16
        $region15: #{tpu_custom_call.1} parent=11 // pred_region
          %s151 = ssub.s32 256, 256
          %152 = vsyncadd [#allocation7], %s151
          %s153 = sshll.u32 [#allocation6], 4
          %s154 = int_to_ptr.vmem [resolvable:$true] %s153
          %159 = dma.hbm_to_vmem [thread:$0]  %s1, 256, %s154, [#allocation7], 64, 64, 4
        $region16: #{tpu_custom_call.1} parent=11 // pred_fallthru
          _
        // Predicated region
        $region17: #{tpu_custom_call.1} parent=11 // pred_check
          %p160 = pneg %p85
        $region18: #{tpu_custom_call.1} parent=11 // pred_check_branch
          %162 = sbr.rel (%p160) target = $region20
        $region19: #{tpu_custom_call.1} parent=11 // pred_region
          %s164 = ssub.s32 256, 256
          %165 = vsyncadd [#allocation7], %s164
          %s166 = sshll.u32 [#allocation8], 4
          %s167 = int_to_ptr.vmem [resolvable:$true] %s166
          %172 = dma.hbm_to_vmem [thread:$0]  %s2, 256, %s167, [#allocation7], 64, 64, 4
        $region20: #{tpu_custom_call.1} parent=11 // pred_fallthru
          _
        // Predicated region
        $region21: #{tpu_custom_call.1} parent=11 // pred_check
          %p173 = pneg %p106
        $region22: #{tpu_custom_call.1} parent=11 // pred_check_branch
          %175 = sbr.rel (%p173) target = $region24
        $region23: #{tpu_custom_call.1} parent=11 // pred_region
          _
        $region24: #{tpu_custom_call.1} parent=11 // pred_fallthru
          _
      $region12: #{tpu_custom_call.1} parent=5 // pred_fallthru
        _
      %p176 = scmp.lt.s32.totalorder %s17, 2
      // Predicated region
      $region25: #{tpu_custom_call.1} parent=5 // pred_check
        %p177 = pneg %p176
      $region26: #{tpu_custom_call.1} parent=5 // pred_check_branch
        %179 = sbr.rel (%p177) target = $region28
      $region27: #{tpu_custom_call.1} parent=5 // pred_region
        // Predicated region
        $region29: #{tpu_custom_call.1} parent=27 // pred_check
          %p180 = pneg %p37
        $region30: #{tpu_custom_call.1} parent=27 // pred_check_branch
          %182 = sbr.rel (%p180) target = $region32
        $region31: #{tpu_custom_call.1} parent=27 // pred_region
          %s183 = sand.u32 %s27, 1
          %s184 = scalar_lea.sflag [#allocation4], %s183
          %s185 = sand.u32 %s27, 1
          %s186 = smul.addr %s185, 4
          %s187 = scalar_lea.vmem [#allocation3], %s186
          %s189 = ssub.s32 64, 64
          %190 = vsyncadd %s184, %s189
          %s191 = smul.addr %s17, 64
          %s192 = scalar_lea.hbm %s0, %s191
          %s194 = sshll.u32 %s187, 4
          %s195 = int_to_ptr.vmem [resolvable:$true] %s194
          %197 = dma.hbm_to_vmem [thread:$0]  %s192, 64, %s195, %s184
        $region32: #{tpu_custom_call.1} parent=27 // pred_fallthru
          _
      $region28: #{tpu_custom_call.1} parent=5 // pred_fallthru
        _
      %p198 = scmp.le.s32.totalorder 1, %s17
      %p199 = scmp.lt.s32.totalorder %s17, 3
      %p200 = pnand %p198, %p199
      %p201 = pneg %p200
      // Predicated region
      $region33: #{tpu_custom_call.1} parent=5 // pred_check
        _
      $region34: #{tpu_custom_call.1} parent=5 // pred_check_branch
        %203 = sbr.rel (%p200) target = $region36
      $region35: #{tpu_custom_call.1} parent=5 // pred_region
        %s204 = ssub.s32 %s17, 1
        %s205 = sand.u32 %s30, 1
        %s206 = scalar_lea.sflag [#allocation4], %s205
        %s207 = sand.u32 %s30, 1
        %s208 = smul.addr %s207, 4
        %s209 = scalar_lea.vmem [#allocation3], %s208
        // Predicated region
        $region37: #{tpu_custom_call.1} parent=35 // pred_check
          %p210 = pneg %p43
        $region38: #{tpu_custom_call.1} parent=35 // pred_check_branch
          %212 = sbr.rel (%p210) target = $region40
        $region39: #{tpu_custom_call.1} parent=35 // pred_region
          %213 = dma.done %s206, 64
        $region40: #{tpu_custom_call.1} parent=35 // pred_fallthru
          _
        // Predicated region
        $region41: #{tpu_custom_call.1} parent=35 // pred_check
          %p214 = pneg %p64
        $region42: #{tpu_custom_call.1} parent=35 // pred_check_branch
          %216 = sbr.rel (%p214) target = $region44
        $region43: #{tpu_custom_call.1} parent=35 // pred_region
          %217 = dma.done [#allocation7], 256
        $region44: #{tpu_custom_call.1} parent=35 // pred_fallthru
          _
        // Predicated region
        $region45: #{tpu_custom_call.1} parent=35 // pred_check
          %p218 = pneg %p85
        $region46: #{tpu_custom_call.1} parent=35 // pred_check_branch
          %220 = sbr.rel (%p218) target = $region48
        $region47: #{tpu_custom_call.1} parent=35 // pred_region
          %221 = dma.done [#allocation7], 256
        $region48: #{tpu_custom_call.1} parent=35 // pred_fallthru
          _
        %s222 = sand.u32 %s30, 1
        %s223 = scalar_lea.sflag [#allocation4], %s222
        %s224 = sand.u32 %s30, 1
        %s225 = smul.addr %s224, 4
        %s226 = scalar_lea.vmem [#allocation3], %s225
        %p227 = pneg %p43
        %p228 = pneg %p40
        %p229 = pneg %p64
        %p230 = pneg %p61
        %p231 = pneg %p85
        %p232 = pneg %p82
        %p233 = pneg %p106
        %p234 = pneg %p103
        %p235 = pneg %p132
        %p236 = pneg %p129
        %s237 = sand.u32 %s119, 1
        %s238 = scalar_lea.sflag [#allocation5], %s237
        %s239 = sand.u32 %s119, 1
        %s240 = smul.addr %s239, 8
        %s241 = scalar_lea.vmem [#allocation9], %s240
        %v243 = vld [vmem:[%s209] sm:$0xf]
        %v244 = vld [vmem:[#allocation6] sm:$0xf]
        %v245 = vld [vmem:[#allocation6 + $0x4] sm:$0xf]
        %v246 = vld [vmem:[#allocation6 + $0x8] sm:$0xf]
        %v247 = vld [vmem:[#allocation6 + $0xc] sm:$0xf]
        %v248 = vld [vmem:[#allocation8] sm:$0xf]
        %v249 = vld [vmem:[#allocation8 + $0x4] sm:$0xf]
        %v250 = vld [vmem:[#allocation8 + $0x8] sm:$0xf]
        %v251 = vld [vmem:[#allocation8 + $0xc] sm:$0xf]
        %v252 = vld [vmem:[%s3] sm:$0x1]
        %v257 = vunpack.c.l.b16 %v244
        %v258 = vunpack.c.l.b16 %v245
        %v259 = vunpack.c.l.b16 %v246
        %v260 = vunpack.c.l.b16 %v247
        %v261 = vpack.c.b16 %v258, %v257
        %v262 = vpack.c.b16 %v260, %v259
        %vm265 = vcmask 261120
        %v267 = vsel %vm265, %v243, 0
        %269 = vmatprep.subr.bf16.mxu0 0
        %270 = vmatpush1.bf16.msra.mxu0 0
        %271 = vmatprep.subr.bf16.mxu0 0
        %272 = vmatpush1.bf16.msra.mxu0 0
        %273 = vmatprep.subr.bf16.mxu0 0
        %274 = vmatpush1.bf16.msra.mxu0 0
        %275 = vmatprep.subr.bf16.mxu0 0
        %276 = vmatpush1.bf16.msra.mxu0 0
        %277 = vmatprep.subr.bf16.mxu0 0
        %278 = vmatpush1.bf16.msra.mxu0 0
        %279 = vmatprep.subr.bf16.mxu0 0
        %280 = vmatpush1.bf16.msra.mxu0 0
        %281 = vmatprep.subr.bf16.mxu0 0
        %282 = vmatpush1.bf16.msra.mxu0 %v262
        %283 = vmatprep.subr.bf16.mxu0 0
        %284 = vmatpush1.bf16.msra.mxu0 %v261
        %285 = vmatprep.subr.bf16.mxu0 0
        %286 = vmatpush2.bf16.msra.mxu0 0
        %287 = vmatprep.subr.bf16.mxu0 0
        %288 = vmatpush2.bf16.msra.mxu0 0
        %289 = vmatprep.subr.bf16.mxu0 0
        %290 = vmatpush2.bf16.msra.mxu0 0
        %291 = vmatprep.subr.bf16.mxu0 0
        %292 = vmatpush2.bf16.msra.mxu0 0
        %293 = vmatprep.subr.bf16.mxu0 0
        %294 = vmatpush2.bf16.msra.mxu0 0
        %295 = vmatprep.subr.bf16.mxu0 0
        %296 = vmatpush2.bf16.msra.mxu0 0
        %297 = vmatprep.subr.bf16.mxu0 0
        %298 = vmatpush2.bf16.msra.mxu0 0
        %299 = vmatprep.subr.bf16.mxu0 0
        %300 = vmatpush2.bf16.msra.mxu0 0
        %301 = vmatprep.mubr.bf16.mxu0 0
        %302 = vmatmul.mubr.bf16.gmra.mxu0 %v267
        %v303 = vpop.f32.mrf.mxu0
        %v304 = vadd.f32 0.0, %v303
        %v305 = vpop.f32.mrf.mxu0
        %v306 = vpop.f32.mrf.mxu0
        %v307 = vpop.f32.mrf.mxu0
        %308 = vdwg.mxu0
        %v309 = vpack.c.bf16 %v304, %v304
        %311 = vrot.lane.b32.xlu0 %v309, 96
        %v312 = vpop.permute.xlu0 %311
        %vm313 = vcmask 64512
        %v315 = vsel %vm313, %v309, 0
        %v318 = vsel %vm313, %v312, 0
        %320 = vmatprep.subr.bf16.mxu0 0
        %321 = vmatpush1.bf16.xpose.msra.mxu0 0
        %322 = vmatprep.subr.bf16.mxu0 0
        %323 = vmatpush1.bf16.xpose.msra.mxu0 0
        %324 = vmatprep.subr.bf16.mxu0 0
        %325 = vmatpush1.bf16.xpose.msra.mxu0 0
        %326 = vmatprep.subr.bf16.mxu0 0
        %327 = vmatpush1.bf16.xpose.msra.mxu0 0
        %328 = vmatprep.subr.bf16.mxu0 0
        %329 = vmatpush1.bf16.xpose.msra.mxu0 0
        %330 = vmatprep.subr.bf16.mxu0 0
        %331 = vmatpush1.bf16.xpose.msra.mxu0 0
        %332 = vmatprep.subr.bf16.mxu0 0
        %333 = vmatpush1.bf16.xpose.msra.mxu0 0
        %334 = vmatprep.subr.bf16.mxu0 0
        %335 = vmatpush1.bf16.xpose.msra.mxu0 %v318
        %336 = vmatprep.subr.bf16.mxu0 0
        %337 = vmatpush2.bf16.xpose.msra.mxu0 0
        %338 = vmatprep.subr.bf16.mxu0 0
        %339 = vmatpush2.bf16.xpose.msra.mxu0 0
        %340 = vmatprep.subr.bf16.mxu0 0
        %341 = vmatpush2.bf16.xpose.msra.mxu0 0
        %342 = vmatprep.subr.bf16.mxu0 0
        %343 = vmatpush2.bf16.xpose.msra.mxu0 0
        %344 = vmatprep.subr.bf16.mxu0 0
        %345 = vmatpush2.bf16.xpose.msra.mxu0 0
        %346 = vmatprep.subr.bf16.mxu0 0
        %347 = vmatpush2.bf16.xpose.msra.mxu0 0
        %348 = vmatprep.subr.bf16.mxu0 0
        %349 = vmatpush2.bf16.xpose.msra.mxu0 0
        %350 = vmatprep.subr.bf16.mxu0 0
        %351 = vmatpush2.bf16.xpose.msra.mxu0 0
        %352 = vmatprep.mubr.bf16.mxu0 0
        %353 = vmatmul.mubr.bf16.gmra.mxu0 %v315
        %v354 = vpop.f32.mrf.mxu0
        %v355 = vadd.f32 0.0, %v354
        %v356 = vpop.f32.mrf.mxu0
        %v357 = vpop.f32.mrf.mxu0
        %v358 = vpop.f32.mrf.mxu0
        %359 = vdwg.mxu0
        %v360 = vsel %vm313, %v355, -inf
        %361 = vmax.xlane.f32.xlu0 %v360
        %v362 = vpop.xlane.xlu0 %361
        %v363 = vsub.f32 %v355, %v362
        %v364 = vmul.f32 %v363, 1.442695
        %v365 = vpow.pop %v364
        %v366 = vsel %vm313, %v365, 0.0
        %367 = vadd.xlane.f32.xlu0 %v366
        %v368 = vpop.xlane.xlu0 %367
        %v369 = vrcp.pop %v368
        %v370 = vmul.f32 %v365, %v369
        %v371 = vpack.c.bf16 %v370, %v370
        %372 = vrot.lane.b32.xlu0 %v309, 64
        %v373 = vpop.permute.xlu0 %372
        %v375 = vsel %vm313, %v371, 0
        %vm377 = vcmask 1043456
        %v379 = vsel %vm377, %v373, 0
        %381 = vmatprep.subr.bf16.mxu0 0
        %382 = vmatpush1.bf16.msra.mxu0 0
        %383 = vmatprep.subr.bf16.mxu0 0
        %384 = vmatpush1.bf16.msra.mxu0 0
        %385 = vmatprep.subr.bf16.mxu0 0
        %386 = vmatpush1.bf16.msra.mxu0 0
        %387 = vmatprep.subr.bf16.mxu0 0
        %388 = vmatpush1.bf16.msra.mxu0 0
        %389 = vmatprep.subr.bf16.mxu0 0
        %390 = vmatpush1.bf16.msra.mxu0 0
        %391 = vmatprep.subr.bf16.mxu0 0
        %392 = vmatpush1.bf16.msra.mxu0 0
        %393 = vmatprep.subr.bf16.mxu0 0
        %394 = vmatpush1.bf16.msra.mxu0 0
        %395 = vmatprep.subr.bf16.mxu0 0
        %396 = vmatpush1.bf16.msra.mxu0 %v379
        %397 = vmatprep.subr.bf16.mxu0 0
        %398 = vmatpush2.bf16.msra.mxu0 0
        %399 = vmatprep.subr.bf16.mxu0 0
        %400 = vmatpush2.bf16.msra.mxu0 0
        %401 = vmatprep.subr.bf16.mxu0 0
        %402 = vmatpush2.bf16.msra.mxu0 0
        %403 = vmatprep.subr.bf16.mxu0 0
        %404 = vmatpush2.bf16.msra.mxu0 0
        %405 = vmatprep.subr.bf16.mxu0 0
        %406 = vmatpush2.bf16.msra.mxu0 0
        %407 = vmatprep.subr.bf16.mxu0 0
        %408 = vmatpush2.bf16.msra.mxu0 0
        %409 = vmatprep.subr.bf16.mxu0 0
        %410 = vmatpush2.bf16.msra.mxu0 0
        %411 = vmatprep.subr.bf16.mxu0 0
        %412 = vmatpush2.bf16.msra.mxu0 0
        %413 = vmatprep.mubr.bf16.mxu0 0
        %414 = vmatmul.mubr.bf16.gmra.mxu0 %v375
        %v415 = vpop.f32.mrf.mxu0
        %v416 = vadd.f32 0.0, %v415
        %v417 = vpop.f32.mrf.mxu0
        %v418 = vpop.f32.mrf.mxu0
        %v419 = vpop.f32.mrf.mxu0
        %420 = vdwg.mxu0
        %421 = vst.msk [vmem:[#allocation2] sm:$0xff] %vm313, %v416
        %422 = vrot.lane.b32.xlu0 %v309, 120
        %v423 = vpop.permute.xlu0 %422
        %424 = vrot.lane.b32.xlu0 %v309, 88
        %v425 = vpop.permute.xlu0 %424
        %v427 = vsel %vm313, %v423, 0
        %v430 = vsel %vm313, %v425, 0
        %432 = vmatprep.subr.bf16.mxu0 0
        %433 = vmatpush1.bf16.xpose.msra.mxu0 0
        %434 = vmatprep.subr.bf16.mxu0 0
        %435 = vmatpush1.bf16.xpose.msra.mxu0 0
        %436 = vmatprep.subr.bf16.mxu0 0
        %437 = vmatpush1.bf16.xpose.msra.mxu0 0
        %438 = vmatprep.subr.bf16.mxu0 0
        %439 = vmatpush1.bf16.xpose.msra.mxu0 0
        %440 = vmatprep.subr.bf16.mxu0 0
        %441 = vmatpush1.bf16.xpose.msra.mxu0 0
        %442 = vmatprep.subr.bf16.mxu0 0
        %443 = vmatpush1.bf16.xpose.msra.mxu0 0
        %444 = vmatprep.subr.bf16.mxu0 0
        %445 = vmatpush1.bf16.xpose.msra.mxu0 0
        %446 = vmatprep.subr.bf16.mxu0 0
        %447 = vmatpush1.bf16.xpose.msra.mxu0 %v430
        %448 = vmatprep.subr.bf16.mxu0 0
        %449 = vmatpush2.bf16.xpose.msra.mxu0 0
        %450 = vmatprep.subr.bf16.mxu0 0
        %451 = vmatpush2.bf16.xpose.msra.mxu0 0
        %452 = vmatprep.subr.bf16.mxu0 0
        %453 = vmatpush2.bf16.xpose.msra.mxu0 0
        %454 = vmatprep.subr.bf16.mxu0 0
        %455 = vmatpush2.bf16.xpose.msra.mxu0 0
        %456 = vmatprep.subr.bf16.mxu0 0
        %457 = vmatpush2.bf16.xpose.msra.mxu0 0
        %458 = vmatprep.subr.bf16.mxu0 0
        %459 = vmatpush2.bf16.xpose.msra.mxu0 0
        %460 = vmatprep.subr.bf16.mxu0 0
        %461 = vmatpush2.bf16.xpose.msra.mxu0 0
        %462 = vmatprep.subr.bf16.mxu0 0
        %463 = vmatpush2.bf16.xpose.msra.mxu0 0
        %464 = vmatprep.mubr.bf16.mxu0 0
        %465 = vmatmul.mubr.bf16.gmra.mxu0 %v427
        %v466 = vpop.f32.mrf.mxu0
        %v467 = vadd.f32 0.0, %v466
        %v468 = vpop.f32.mrf.mxu0
        %v469 = vpop.f32.mrf.mxu0
        %v470 = vpop.f32.mrf.mxu0
        %471 = vdwg.mxu0
        %v472 = vsel %vm313, %v467, -inf
        %473 = vmax.xlane.f32.xlu0 %v472
        %v474 = vpop.xlane.xlu0 %473
        %v475 = vsub.f32 %v467, %v474
        %v476 = vmul.f32 %v475, 1.442695
        %v477 = vpow.pop %v476
        %v478 = vsel %vm313, %v477, 0.0
        %479 = vadd.xlane.f32.xlu0 %v478
        %v480 = vpop.xlane.xlu0 %479
        %v481 = vrcp.pop %v480
        %v482 = vmul.f32 %v477, %v481
        %v483 = vpack.c.bf16 %v482, %v482
        %484 = vrot.lane.b32.xlu0 %v309, 56
        %v485 = vpop.permute.xlu0 %484
        %v487 = vsel %vm313, %v483, 0
        %v490 = vsel %vm377, %v485, 0
        %492 = vmatprep.subr.bf16.mxu0 0
        %493 = vmatpush1.bf16.msra.mxu0 0
        %494 = vmatprep.subr.bf16.mxu0 0
        %495 = vmatpush1.bf16.msra.mxu0 0
        %496 = vmatprep.subr.bf16.mxu0 0
        %497 = vmatpush1.bf16.msra.mxu0 0
        %498 = vmatprep.subr.bf16.mxu0 0
        %499 = vmatpush1.bf16.msra.mxu0 0
        %500 = vmatprep.subr.bf16.mxu0 0
        %501 = vmatpush1.bf16.msra.mxu0 0
        %502 = vmatprep.subr.bf16.mxu0 0
        %503 = vmatpush1.bf16.msra.mxu0 0
        %504 = vmatprep.subr.bf16.mxu0 0
        %505 = vmatpush1.bf16.msra.mxu0 0
        %506 = vmatprep.subr.bf16.mxu0 0
        %507 = vmatpush1.bf16.msra.mxu0 %v490
        %508 = vmatprep.subr.bf16.mxu0 0
        %509 = vmatpush2.bf16.msra.mxu0 0
        %510 = vmatprep.subr.bf16.mxu0 0
        %511 = vmatpush2.bf16.msra.mxu0 0
        %512 = vmatprep.subr.bf16.mxu0 0
        %513 = vmatpush2.bf16.msra.mxu0 0
        %514 = vmatprep.subr.bf16.mxu0 0
        %515 = vmatpush2.bf16.msra.mxu0 0
        %516 = vmatprep.subr.bf16.mxu0 0
        %517 = vmatpush2.bf16.msra.mxu0 0
        %518 = vmatprep.subr.bf16.mxu0 0
        %519 = vmatpush2.bf16.msra.mxu0 0
        %520 = vmatprep.subr.bf16.mxu0 0
        %521 = vmatpush2.bf16.msra.mxu0 0
        %522 = vmatprep.subr.bf16.mxu0 0
        %523 = vmatpush2.bf16.msra.mxu0 0
        %524 = vmatprep.mubr.bf16.mxu0 0
        %525 = vmatmul.mubr.bf16.gmra.mxu0 %v487
        %v526 = vpop.f32.mrf.mxu0
        %v527 = vadd.f32 0.0, %v526
        %v528 = vpop.f32.mrf.mxu0
        %v529 = vpop.f32.mrf.mxu0
        %v530 = vpop.f32.mrf.mxu0
        %531 = vdwg.mxu0
        %533 = vrot.lane.b32.xlu0 %v527, 8
        %v534 = vpop.permute.xlu0 %533
        %vm536 = vcmask 130112
        %537 = vst.msk [vmem:[#allocation2] sm:$0xff] %vm536, %v534
        %538 = vrot.lane.b32.xlu0 %v309, 112
        %v539 = vpop.permute.xlu0 %538
        %540 = vrot.lane.b32.xlu0 %v309, 80
        %v541 = vpop.permute.xlu0 %540
        %v543 = vsel %vm313, %v539, 0
        %v546 = vsel %vm313, %v541, 0
        %548 = vmatprep.subr.bf16.mxu0 0
        %549 = vmatpush1.bf16.xpose.msra.mxu0 0
        %550 = vmatprep.subr.bf16.mxu0 0
        %551 = vmatpush1.bf16.xpose.msra.mxu0 0
        %552 = vmatprep.subr.bf16.mxu0 0
        %553 = vmatpush1.bf16.xpose.msra.mxu0 0
        %554 = vmatprep.subr.bf16.mxu0 0
        %555 = vmatpush1.bf16.xpose.msra.mxu0 0
        %556 = vmatprep.subr.bf16.mxu0 0
        %557 = vmatpush1.bf16.xpose.msra.mxu0 0
        %558 = vmatprep.subr.bf16.mxu0 0
        %559 = vmatpush1.bf16.xpose.msra.mxu0 0
        %560 = vmatprep.subr.bf16.mxu0 0
        %561 = vmatpush1.bf16.xpose.msra.mxu0 0
        %562 = vmatprep.subr.bf16.mxu0 0
        %563 = vmatpush1.bf16.xpose.msra.mxu0 %v546
        %564 = vmatprep.subr.bf16.mxu0 0
        %565 = vmatpush2.bf16.xpose.msra.mxu0 0
        %566 = vmatprep.subr.bf16.mxu0 0
        %567 = vmatpush2.bf16.xpose.msra.mxu0 0
        %568 = vmatprep.subr.bf16.mxu0 0
        %569 = vmatpush2.bf16.xpose.msra.mxu0 0
        %570 = vmatprep.subr.bf16.mxu0 0
        %571 = vmatpush2.bf16.xpose.msra.mxu0 0
        %572 = vmatprep.subr.bf16.mxu0 0
        %573 = vmatpush2.bf16.xpose.msra.mxu0 0
        %574 = vmatprep.subr.bf16.mxu0 0
        %575 = vmatpush2.bf16.xpose.msra.mxu0 0
        %576 = vmatprep.subr.bf16.mxu0 0
        %577 = vmatpush2.bf16.xpose.msra.mxu0 0
        %578 = vmatprep.subr.bf16.mxu0 0
        %579 = vmatpush2.bf16.xpose.msra.mxu0 0
        %580 = vmatprep.mubr.bf16.mxu0 0
        %581 = vmatmul.mubr.bf16.gmra.mxu0 %v543
        %v582 = vpop.f32.mrf.mxu0
        %v583 = vadd.f32 0.0, %v582
        %v584 = vpop.f32.mrf.mxu0
        %v585 = vpop.f32.mrf.mxu0
        %v586 = vpop.f32.mrf.mxu0
        %587 = vdwg.mxu0
        %v588 = vsel %vm313, %v583, -inf
        %589 = vmax.xlane.f32.xlu0 %v588
        %v590 = vpop.xlane.xlu0 %589
        %v591 = vsub.f32 %v583, %v590
        %v592 = vmul.f32 %v591, 1.442695
        %v593 = vpow.pop %v592
        %v594 = vsel %vm313, %v593, 0.0
        %595 = vadd.xlane.f32.xlu0 %v594
        %v596 = vpop.xlane.xlu0 %595
        %v597 = vrcp.pop %v596
        %v598 = vmul.f32 %v593, %v597
        %v599 = vpack.c.bf16 %v598, %v598
        %600 = vrot.lane.b32.xlu0 %v309, 48
        %v601 = vpop.permute.xlu0 %600
        %v603 = vsel %vm313, %v599, 0
        %v606 = vsel %vm377, %v601, 0
        %608 = vmatprep.subr.bf16.mxu0 0
        %609 = vmatpush1.bf16.msra.mxu0 0
        %610 = vmatprep.subr.bf16.mxu0 0
        %611 = vmatpush1.bf16.msra.mxu0 0
        %612 = vmatprep.subr.bf16.mxu0 0
        %613 = vmatpush1.bf16.msra.mxu0 0
        %614 = vmatprep.subr.bf16.mxu0 0
        %615 = vmatpush1.bf16.msra.mxu0 0
        %616 = vmatprep.subr.bf16.mxu0 0
        %617 = vmatpush1.bf16.msra.mxu0 0
        %618 = vmatprep.subr.bf16.mxu0 0
        %619 = vmatpush1.bf16.msra.mxu0 0
        %620 = vmatprep.subr.bf16.mxu0 0
        %621 = vmatpush1.bf16.msra.mxu0 0
        %622 = vmatprep.subr.bf16.mxu0 0
        %623 = vmatpush1.bf16.msra.mxu0 %v606
        %624 = vmatprep.subr.bf16.mxu0 0
        %625 = vmatpush2.bf16.msra.mxu0 0
        %626 = vmatprep.subr.bf16.mxu0 0
        %627 = vmatpush2.bf16.msra.mxu0 0
        %628 = vmatprep.subr.bf16.mxu0 0
        %629 = vmatpush2.bf16.msra.mxu0 0
        %630 = vmatprep.subr.bf16.mxu0 0
        %631 = vmatpush2.bf16.msra.mxu0 0
        %632 = vmatprep.subr.bf16.mxu0 0
        %633 = vmatpush2.bf16.msra.mxu0 0
        %634 = vmatprep.subr.bf16.mxu0 0
        %635 = vmatpush2.bf16.msra.mxu0 0
        %636 = vmatprep.subr.bf16.mxu0 0
        %637 = vmatpush2.bf16.msra.mxu0 0
        %638 = vmatprep.subr.bf16.mxu0 0
        %639 = vmatpush2.bf16.msra.mxu0 0
        %640 = vmatprep.mubr.bf16.mxu0 0
        %641 = vmatmul.mubr.bf16.gmra.mxu0 %v603
        %v642 = vpop.f32.mrf.mxu0
        %v643 = vadd.f32 0.0, %v642
        %v644 = vpop.f32.mrf.mxu0
        %v645 = vpop.f32.mrf.mxu0
        %v646 = vpop.f32.mrf.mxu0
        %647 = vdwg.mxu0
        %649 = vrot.lane.b32.xlu0 %v643, 16
        %v650 = vpop.permute.xlu0 %649
        %vm652 = vcmask 195712
        %653 = vst.msk [vmem:[#allocation2] sm:$0xff] %vm652, %v650
        %654 = vrot.lane.b32.xlu0 %v309, 104
        %v655 = vpop.permute.xlu0 %654
        %656 = vrot.lane.b32.xlu0 %v309, 72
        %v657 = vpop.permute.xlu0 %656
        %v659 = vsel %vm313, %v655, 0
        %v662 = vsel %vm313, %v657, 0
        %664 = vmatprep.subr.bf16.mxu0 0
        %665 = vmatpush1.bf16.xpose.msra.mxu0 0
        %666 = vmatprep.subr.bf16.mxu0 0
        %667 = vmatpush1.bf16.xpose.msra.mxu0 0
        %668 = vmatprep.subr.bf16.mxu0 0
        %669 = vmatpush1.bf16.xpose.msra.mxu0 0
        %670 = vmatprep.subr.bf16.mxu0 0
        %671 = vmatpush1.bf16.xpose.msra.mxu0 0
        %672 = vmatprep.subr.bf16.mxu0 0
        %673 = vmatpush1.bf16.xpose.msra.mxu0 0
        %674 = vmatprep.subr.bf16.mxu0 0
        %675 = vmatpush1.bf16.xpose.msra.mxu0 0
        %676 = vmatprep.subr.bf16.mxu0 0
        %677 = vmatpush1.bf16.xpose.msra.mxu0 0
        %678 = vmatprep.subr.bf16.mxu0 0
        %679 = vmatpush1.bf16.xpose.msra.mxu0 %v662
        %680 = vmatprep.subr.bf16.mxu0 0
        %681 = vmatpush2.bf16.xpose.msra.mxu0 0
        %682 = vmatprep.subr.bf16.mxu0 0
        %683 = vmatpush2.bf16.xpose.msra.mxu0 0
        %684 = vmatprep.subr.bf16.mxu0 0
        %685 = vmatpush2.bf16.xpose.msra.mxu0 0
        %686 = vmatprep.subr.bf16.mxu0 0
        %687 = vmatpush2.bf16.xpose.msra.mxu0 0
        %688 = vmatprep.subr.bf16.mxu0 0
        %689 = vmatpush2.bf16.xpose.msra.mxu0 0
        %690 = vmatprep.subr.bf16.mxu0 0
        %691 = vmatpush2.bf16.xpose.msra.mxu0 0
        %692 = vmatprep.subr.bf16.mxu0 0
        %693 = vmatpush2.bf16.xpose.msra.mxu0 0
        %694 = vmatprep.subr.bf16.mxu0 0
        %695 = vmatpush2.bf16.xpose.msra.mxu0 0
        %696 = vmatprep.mubr.bf16.mxu0 0
        %697 = vmatmul.mubr.bf16.gmra.mxu0 %v659
        %v698 = vpop.f32.mrf.mxu0
        %v699 = vadd.f32 0.0, %v698
        %v700 = vpop.f32.mrf.mxu0
        %v701 = vpop.f32.mrf.mxu0
        %v702 = vpop.f32.mrf.mxu0
        %703 = vdwg.mxu0
        %v704 = vsel %vm313, %v699, -inf
        %705 = vmax.xlane.f32.xlu0 %v704
        %v706 = vpop.xlane.xlu0 %705
        %v707 = vsub.f32 %v699, %v706
        %v708 = vmul.f32 %v707, 1.442695
        %v709 = vpow.pop %v708
        %v710 = vsel %vm313, %v709, 0.0
        %711 = vadd.xlane.f32.xlu0 %v710
        %v712 = vpop.xlane.xlu0 %711
        %v713 = vrcp.pop %v712
        %v714 = vmul.f32 %v709, %v713
        %v715 = vpack.c.bf16 %v714, %v714
        %716 = vrot.lane.b32.xlu0 %v309, 40
        %v717 = vpop.permute.xlu0 %716
        %v719 = vsel %vm313, %v715, 0
        %v722 = vsel %vm377, %v717, 0
        %724 = vmatprep.subr.bf16.mxu0 0
        %725 = vmatpush1.bf16.msra.mxu0 0
        %726 = vmatprep.subr.bf16.mxu0 0
        %727 = vmatpush1.bf16.msra.mxu0 0
        %728 = vmatprep.subr.bf16.mxu0 0
        %729 = vmatpush1.bf16.msra.mxu0 0
        %730 = vmatprep.subr.bf16.mxu0 0
        %731 = vmatpush1.bf16.msra.mxu0 0
        %732 = vmatprep.subr.bf16.mxu0 0
        %733 = vmatpush1.bf16.msra.mxu0 0
        %734 = vmatprep.subr.bf16.mxu0 0
        %735 = vmatpush1.bf16.msra.mxu0 0
        %736 = vmatprep.subr.bf16.mxu0 0
        %737 = vmatpush1.bf16.msra.mxu0 0
        %738 = vmatprep.subr.bf16.mxu0 0
        %739 = vmatpush1.bf16.msra.mxu0 %v722
        %740 = vmatprep.subr.bf16.mxu0 0
        %741 = vmatpush2.bf16.msra.mxu0 0
        %742 = vmatprep.subr.bf16.mxu0 0
        %743 = vmatpush2.bf16.msra.mxu0 0
        %744 = vmatprep.subr.bf16.mxu0 0
        %745 = vmatpush2.bf16.msra.mxu0 0
        %746 = vmatprep.subr.bf16.mxu0 0
        %747 = vmatpush2.bf16.msra.mxu0 0
        %748 = vmatprep.subr.bf16.mxu0 0
        %749 = vmatpush2.bf16.msra.mxu0 0
        %750 = vmatprep.subr.bf16.mxu0 0
        %751 = vmatpush2.bf16.msra.mxu0 0
        %752 = vmatprep.subr.bf16.mxu0 0
        %753 = vmatpush2.bf16.msra.mxu0 0
        %754 = vmatprep.subr.bf16.mxu0 0
        %755 = vmatpush2.bf16.msra.mxu0 0
        %756 = vmatprep.mubr.bf16.mxu0 0
        %757 = vmatmul.mubr.bf16.gmra.mxu0 %v719
        %v758 = vpop.f32.mrf.mxu0
        %v759 = vadd.f32 0.0, %v758
        %v760 = vpop.f32.mrf.mxu0
        %v761 = vpop.f32.mrf.mxu0
        %v762 = vpop.f32.mrf.mxu0
        %763 = vdwg.mxu0
        %765 = vrot.lane.b32.xlu0 %v759, 24
        %v766 = vpop.permute.xlu0 %765
        %vm768 = vcmask 261312
        %769 = vst.msk [vmem:[#allocation2] sm:$0xff] %vm768, %v766
        %v770 = vld [vmem:[#allocation2] sm:$0xff]
        %v771 = vpack.c.bf16 %v770, %v770
        %v773 = vlaneseq
        %v774 = vshrl.u32 %v773, 7
        %v775 = vsub.s32 0, %v774
        %v776 = vrot.slane %v252, %v775
        %v782 = vunpack.c.l.b16 %v248
        %v783 = vunpack.c.l.b16 %v249
        %v784 = vunpack.c.l.b16 %v250
        %v785 = vunpack.c.l.b16 %v251
        %v786 = vpack.c.b16 %v783, %v782
        %v787 = vpack.c.b16 %v785, %v784
        %v791 = vsel %vm265, %v771, 0
        %793 = vmatprep.subr.bf16.mxu0 0
        %794 = vmatpush1.bf16.msra.mxu0 0
        %795 = vmatprep.subr.bf16.mxu0 0
        %796 = vmatpush1.bf16.msra.mxu0 0
        %797 = vmatprep.subr.bf16.mxu0 0
        %798 = vmatpush1.bf16.msra.mxu0 0
        %799 = vmatprep.subr.bf16.mxu0 0
        %800 = vmatpush1.bf16.msra.mxu0 0
        %801 = vmatprep.subr.bf16.mxu0 0
        %802 = vmatpush1.bf16.msra.mxu0 0
        %803 = vmatprep.subr.bf16.mxu0 0
        %804 = vmatpush1.bf16.msra.mxu0 0
        %805 = vmatprep.subr.bf16.mxu0 0
        %806 = vmatpush1.bf16.msra.mxu0 %v787
        %807 = vmatprep.subr.bf16.mxu0 0
        %808 = vmatpush1.bf16.msra.mxu0 %v786
        %809 = vmatprep.subr.bf16.mxu0 0
        %810 = vmatpush2.bf16.msra.mxu0 0
        %811 = vmatprep.subr.bf16.mxu0 0
        %812 = vmatpush2.bf16.msra.mxu0 0
        %813 = vmatprep.subr.bf16.mxu0 0
        %814 = vmatpush2.bf16.msra.mxu0 0
        %815 = vmatprep.subr.bf16.mxu0 0
        %816 = vmatpush2.bf16.msra.mxu0 0
        %817 = vmatprep.subr.bf16.mxu0 0
        %818 = vmatpush2.bf16.msra.mxu0 0
        %819 = vmatprep.subr.bf16.mxu0 0
        %820 = vmatpush2.bf16.msra.mxu0 0
        %821 = vmatprep.subr.bf16.mxu0 0
        %822 = vmatpush2.bf16.msra.mxu0 0
        %823 = vmatprep.subr.bf16.mxu0 0
        %824 = vmatpush2.bf16.msra.mxu0 0
        %825 = vmatprep.mubr.bf16.mxu0 0
        %826 = vmatmul.mubr.bf16.gmra.mxu0 %v791
        %v827 = vpop.f32.mrf.mxu0
        %v828 = vadd.f32 %v776, %v827
        %v829 = vpop.f32.mrf.mxu0
        %v830 = vpop.f32.mrf.mxu0
        %v831 = vpop.f32.mrf.mxu0
        %832 = vdwg.mxu0
        %833 = vst.msk [vmem:[%s241] sm:$0xff] %vm265, %v828
        %s834 = sand.u32 %s119, 1
        %s835 = scalar_lea.sflag [#allocation5], %s834
        %s836 = sand.u32 %s119, 1
        %s837 = smul.addr %s836, 8
        %s838 = scalar_lea.vmem [#allocation9], %s837
        // Predicated region
        $region49: #{tpu_custom_call.1} parent=35 // pred_check
          %p839 = pneg %p129
        $region50: #{tpu_custom_call.1} parent=35 // pred_check_branch
          %841 = sbr.rel (%p839) target = $region52
        $region51: #{tpu_custom_call.1} parent=35 // pred_region
          %s843 = ssub.s32 128, 128
          %844 = vsyncadd %s835, %s843
          %s845 = smul.addr %s22, 128
          %s846 = scalar_lea.hbm %s4, %s845
          %s848 = sshll.u32 %s838, 4
          %s849 = int_to_ptr.vmem [resolvable:$true] %s848
          %851 = dma.vmem_to_hbm [thread:$0]  %s849, 128, %s846, %s835
        $region52: #{tpu_custom_call.1} parent=35 // pred_fallthru
          _
      $region36: #{tpu_custom_call.1} parent=5 // pred_fallthru
        _
      %p852 = scmp.le.s32.totalorder 2, %s17
      // Predicated region
      $region53: #{tpu_custom_call.1} parent=5 // pred_check
        %p853 = pneg %p852
      $region54: #{tpu_custom_call.1} parent=5 // pred_check_branch
        %855 = sbr.rel (%p853) target = $region56
      $region55: #{tpu_custom_call.1} parent=5 // pred_region
        %s856 = ssub.s32 %s17, 2
        // Predicated region
        $region57: #{tpu_custom_call.1} parent=55 // pred_check
          %p857 = pneg %p135
        $region58: #{tpu_custom_call.1} parent=55 // pred_check_branch
          %859 = sbr.rel (%p857) target = $region60
        $region59: #{tpu_custom_call.1} parent=55 // pred_region
          %s860 = sand.u32 %s120, 1
          %s861 = scalar_lea.sflag [#allocation5], %s860
          %s862 = sand.u32 %s120, 1
          %s863 = smul.addr %s862, 8
          %s864 = scalar_lea.vmem [#allocation9], %s863
          %865 = dma.done %s861, 128
        $region60: #{tpu_custom_call.1} parent=55 // pred_fallthru
          _
      $region56: #{tpu_custom_call.1} parent=5 // pred_fallthru
        _
    $region6: #{tpu_custom_call.1} parent=1 // loop_footer
      %s21 = sadd.s32 1, %s17
    $region7: #{tpu_custom_call.1} parent=1 // loop_footer_branch
      %16 = sbr.rel target = $region3
    $region8: #{tpu_custom_call.1} parent=1 // loop_exit
      _
    %866 = vsyncpa [#allocation4], 1
    %s867 = scalar_lea.sflag [#allocation4], 1
    %868 = vsyncpa %s867, 1
    %869 = vsyncpa [#allocation7], 1
    %870 = vsyncpa [#allocation5], 1
    %s871 = scalar_lea.sflag [#allocation5], 1
    %872 = vsyncpa %s871, 1

</llo_original>
